<compile_context>
chip_gen: v7x
topology: tpu7x:2x2x1
jax: 0.10.0
libtpu: 0.0.40
codegen_flags: <defaults>
</compile_context>

<pallas_src>
import jax
import jax.numpy as jnp
from jax.experimental import pallas as pl
from jax.experimental.pallas import tpu as pltpu


def _round_up(n, m):
    return ((n + m - 1) // m) * m


def binary_classifier_kernel(x_ref, w_ref, b_ref, o_ref):
    # x_ref: (TM, D) VMEM   w_ref: (1, D) VMEM   b_ref: (1,) SMEM   o_ref: (TM, 1) VMEM
    prod = x_ref[...] * w_ref[...]                       # VPU elementwise, w broadcast over sublanes
    z = jnp.sum(prod, axis=1, keepdims=True)             # XLU lane reduce -> (TM, 1) f32
    z = z + b_ref[0]                                     # scalar bias from SMEM
    y = pl.reciprocal(1.0 + jnp.exp(-z), approx=False)   # sigmoid: EUP exp + exact reciprocal
    o_ref[...] = y.astype(o_ref.dtype)


def _vmem_plan():
    """Generation-aware (x_tile_budget_bytes, vmem_limit_bytes, small_vmem_chip)."""
    phys = None
    try:
        info = pltpu.get_tpu_info()
        phys = getattr(info, "vmem_capacity_bytes", None)
    except Exception:
        phys = None
    if not phys:
        # Conservative fallback: assume the smallest (v7x-sized, 64 MiB) VMEM.
        phys = 64 * 1024 * 1024
    if phys >= 96 * 1024 * 1024:
        # v5e / v6e: 128 MiB physical VMEM -> big tiles, generous scoped limit.
        return 64 * 1024 * 1024, 96 * 1024 * 1024, False
    # v7x-like: 64 MiB per TensorCore, 2 TCs per chip -> ~75% of physical.
    return 40 * 1024 * 1024, 48 * 1024 * 1024, True


def binary_classifier(x, w, b, *, block_rows=None):
    """x: (B, D); w: (1, D) / (D, 1) / (D,); b: (1,) -> sigmoid(x @ W^T + b), shape (B, 1)."""
    B, D = x.shape
    w_row = w.reshape(1, D).astype(jnp.float32)
    b_vec = b.reshape(1).astype(jnp.float32)

    budget_bytes, vmem_limit, small_vmem = _vmem_plan()

    # Per-row VMEM cost: double-buffered x tile rows plus a conservative f32
    # (tm, D) intermediate for x*w (matters when x is narrower than f32).
    per_row = D * (2 * x.dtype.itemsize + 4)
    tm = max(8, (budget_bytes // per_row) // 8 * 8)      # grow tm to fill the budget
    if block_rows is not None:
        tm = max(8, min(tm, _round_up(block_rows, 8)))   # optional user cap
    if small_vmem:
        # Keep >= ~4 grid steps so the "parallel" batch axis splits across both TCs.
        tm = max(8, min(tm, _round_up(pl.cdiv(B, 4), 8)))
    tm = min(tm, _round_up(B, 8))                        # never exceed the (padded) batch

    grid = (pl.cdiv(B, tm),)                             # ragged last block handled by Pallas

    return pl.pallas_call(
        binary_classifier_kernel,
        out_shape=jax.ShapeDtypeStruct((B, 1), x.dtype),
        grid=grid,
        in_specs=[
            pl.BlockSpec((tm, D), lambda i: (i, 0)),            # x batch tiles (pipelined)
            pl.BlockSpec((1, D), lambda i: (0, 0)),             # weight row, constant block
            pl.BlockSpec(memory_space=pltpu.MemorySpace.SMEM),  # scalar bias in SMEM
        ],
        out_specs=pl.BlockSpec((tm, 1), lambda i: (i, 0)),
        compiler_params=pltpu.CompilerParams(
            dimension_semantics=("parallel",),   # shard batch tiles across TCs on v7x
            vmem_limit_bytes=vmem_limit,
        ),
    )(x, w_row, b_vec)


if __name__ == "__main__":
    key = jax.random.PRNGKey(0)
    k_x, k_w, k_b, k_rest = jax.random.split(key, 4)

    # --- Small shape matching the module spec: batch=2, input_dim=32 ---
    batch, input_dim = 2, 32
    bound = 1.0 / jnp.sqrt(jnp.float32(input_dim))
    # PyTorch nn.Linear layout: weight (1, input_dim), bias (1,), U(-1/sqrt(D), 1/sqrt(D)).
    w = jax.random.uniform(k_w, (1, input_dim), jnp.float32, -bound, bound)
    b = jax.random.uniform(k_b, (1,), jnp.float32, -bound, bound)
    x = jax.random.normal(k_x, (batch, input_dim), jnp.float32)

    out = binary_classifier(x, w, b)
    jax.block_until_ready(out)
    ref = jax.nn.sigmoid(x @ w.T + b)
    assert out.shape == (batch, 1)
    assert jnp.allclose(out, ref, atol=1e-5, rtol=1e-5)

    # --- Multi-tile path: ragged B forces a partial last block (no padding) ---
    batch2, input_dim2 = 300, 256
    k_w2, k_b2, k_x2 = jax.random.split(k_rest, 3)
    bound2 = 1.0 / jnp.sqrt(jnp.float32(input_dim2))
    w2 = jax.random.uniform(k_w2, (1, input_dim2), jnp.float32, -bound2, bound2)
    b2 = jax.random.uniform(k_b2, (1,), jnp.float32, -bound2, bound2)
    x2 = jax.random.normal(k_x2, (batch2, input_dim2), jnp.float32)

    # block_rows=128 forces a 3-step grid (128 + 128 + 44) to exercise the
    # ragged-last-block path; default (None) auto-sizes tm from the VMEM budget.
    out2 = binary_classifier(x2, w2, b2, block_rows=128)
    jax.block_until_ready(out2)
    ref2 = jax.nn.sigmoid(x2 @ w2.T + b2)
    assert out2.shape == (batch2, 1)
    assert jnp.allclose(out2, ref2, atol=1e-5, rtol=1e-5)

    # --- Auto-sized tm path (fills the generation-aware VMEM budget) ---
    out3 = binary_classifier(x2, w2, b2)
    jax.block_until_ready(out3)
    assert jnp.allclose(out3, ref2, atol=1e-5, rtol=1e-5)

    print("KERNEL_OK")
</pallas_src>

<mosaic_0001>
module attributes {stable_mosaic.version = 11 : i64} {
  func.func @binary_classifier_kernel(%arg0: i32, %arg1: memref<8x32xf32, #tpu.memory_space<vmem>>, %arg2: memref<1x32xf32, #tpu.memory_space<vmem>>, %arg3: memref<1xf32, #tpu.memory_space<smem>>, %arg4: memref<8x1xf32, #tpu.memory_space<vmem>>) attributes {dimension_semantics = [#tpu.dimension_semantics<parallel>], iteration_bounds = array<i64: 1>, scalar_prefetch = 0 : i64, scratch_operands = 0 : i64, tpu.core_type = #tpu.core_type<tc>, window_params = [{transform_indices = @transform_0, window_bounds = array<i64: 8, 32>}, {pipeline_mode = #tpu.pipeline_mode<synchronous>, transform_indices = @transform_1, window_bounds = array<i64: 1, 32>}, {transform_indices = @transform_2, window_bounds = array<i64: 1>}, {transform_indices = @transform_3, window_bounds = array<i64: 8, 1>}]} {
    %c0 = arith.constant 0 : index
    %c0_0 = arith.constant 0 : index
    %0 = vector.load %arg1[%c0, %c0_0] : memref<8x32xf32, #tpu.memory_space<vmem>>, vector<8x32xf32>
    %c0_1 = arith.constant 0 : index
    %c0_2 = arith.constant 0 : index
    %1 = vector.load %arg2[%c0_1, %c0_2] : memref<1x32xf32, #tpu.memory_space<vmem>>, vector<1x32xf32>
    %2 = vector.broadcast %1 : vector<1x32xf32> to vector<8x32xf32>
    %3 = arith.mulf %0, %2 : vector<8x32xf32>
    %cst = arith.constant dense<0.000000e+00> : vector<8xf32>
    %4 = vector.multi_reduction <add>, %3, %cst [1] : vector<8x32xf32> to vector<8xf32>
    %5 = vector.shape_cast %4 : vector<8xf32> to vector<8x1xf32>
    %c0_3 = arith.constant 0 : index
    %6 = memref.load %arg3[%c0_3] : memref<1xf32, #tpu.memory_space<smem>>
    %7 = vector.broadcast %6 : f32 to vector<8x1xf32>
    %8 = arith.addf %5, %7 : vector<8x1xf32>
    %cst_4 = arith.constant 0.000000e+00 : f32
    %9 = vector.broadcast %cst_4 : f32 to vector<8x1xf32>
    %10 = arith.subf %9, %8 : vector<8x1xf32>
    %11 = math.exp %10 : vector<8x1xf32>
    %cst_5 = arith.constant 1.000000e+00 : f32
    %12 = vector.broadcast %cst_5 : f32 to vector<8x1xf32>
    %13 = arith.addf %12, %11 : vector<8x1xf32>
    %14 = tpu.reciprocal %13 : vector<8x1xf32> -> vector<8x1xf32>
    %c0_6 = arith.constant 0 : index
    %c0_7 = arith.constant 0 : index
    %15 = vector.load %arg4[%c0_6, %c0_7] : memref<8x1xf32, #tpu.memory_space<vmem>>, vector<8x1xf32>
    tpu.vector_store %arg4[%c0_6, %c0_7], %14 {strides = array<i32>} : memref<8x1xf32, #tpu.memory_space<vmem>>, vector<8x1xf32>,
    return
  }
  func.func @transform_0(%arg0: i32) -> (i32, i32) {
    %c0_i32 = arith.constant 0 : i32
    %c0_i32_0 = arith.constant 0 : i32
    return %arg0, %c0_i32 : i32, i32
  }
  func.func @transform_1(%arg0: i32) -> (i32, i32) {
    %c0_i32 = arith.constant 0 : i32
    %c0_i32_0 = arith.constant 0 : i32
    %c0_i32_1 = arith.constant 0 : i32
    return %c0_i32, %c0_i32_0 : i32, i32
  }
  func.func @transform_2(%arg0: i32) -> i32 {
    %c0_i32 = arith.constant 0 : i32
    %c0_i32_0 = arith.constant 0 : i32
    return %c0_i32 : i32
  }
  func.func @transform_3(%arg0: i32) -> (i32, i32) {
    %c0_i32 = arith.constant 0 : i32
    %c0_i32_0 = arith.constant 0 : i32
    return %arg0, %c0_i32 : i32, i32
  }
}

</mosaic_0001>

<llo_original>
// kernel: tpu_custom_call.1
$region0: #{tpu_custom_call.1}
  #allocation0 [shape = 'u32[]', space=smem, size = 0x4, offset = 0x4, fixed_abs, tag = 'smem constant byte address 0x4 - core index']
  #allocation1 [shape = 'u32[144,128]{1,0:T(1,128)}', space=vmem, size = 0x12000, scoped, tag = 'internal scratch']
  #allocation2 [shape = 'f32[1]{0:T(128)S(6)}', space=smem, size = 0x200, scoped, tag = 'scoped memory for tpu_custom_call.1']
  %s0 = inlined_call_operand.vmem [shape: f32[2,32], index: 0, kind: input, shape index: {}]
  %s1 = inlined_call_operand.vmem [shape: f32[1,32], index: 1, kind: input, shape index: {}]
  %s2 = inlined_call_operand.<no memory space> [shape: f32[1], index: 2, kind: input, shape index: {}]
  %s3 = inlined_call_operand.vmem [shape: f32[2,1], index: 3, kind: output, shape index: {}]
  %s4 = sld [smem:[#allocation0]]
  $region52: #{tpu_custom_call.1} parent=0
    _
  %s6 = ssub.s32 1, %s4
  %s7 = scalar_select 0, %s6, %s4
  %8 = sst [smem:[#allocation2]] %s2
  $region1: #{tpu_custom_call.1} parent=0
    #allocation3 [shape = 'u8[4096]{0}', space=vmem, size = 0x1000, scoped, tag = 'output window, operand 0, single buffered']
    // Predicated region
    $region2: #{tpu_custom_call.1} parent=1 // pred_check
      _
    $region3: #{tpu_custom_call.1} parent=1 // pred_check_branch
      %10 = sbr.rel (0) target = $region5
    $region4: #{tpu_custom_call.1} parent=1 // pred_region
      _
    $region5: #{tpu_custom_call.1} parent=1 // pred_fallthru
      _
    // Predicated region
    $region6: #{tpu_custom_call.1} parent=1 // pred_check
      _
    $region7: #{tpu_custom_call.1} parent=1 // pred_check_branch
      %12 = sbr.rel (0) target = $region9
    $region8: #{tpu_custom_call.1} parent=1 // pred_region
      _
    $region9: #{tpu_custom_call.1} parent=1 // pred_fallthru
      _
    // Predicated region
    $region10: #{tpu_custom_call.1} parent=1 // pred_check
      _
    $region11: #{tpu_custom_call.1} parent=1 // pred_check_branch
      %14 = sbr.rel (0) target = $region13
    $region12: #{tpu_custom_call.1} parent=1 // pred_region
      _
    $region13: #{tpu_custom_call.1} parent=1 // pred_fallthru
      _
    %v15 = vld [vmem:[%s0] sm:$0xff]
    %v16 = vld [vmem:[%s1] sm:$0x1]
    %v18 = vlaneseq
    %v19 = vshrl.u32 %v18, 7
    %v20 = vsub.s32 0, %v19
    %v21 = vrot.slane %v16, %v20
    %v23 = vmul.f32 %v15, %v21
    %vm24 = vcmask 261120
    %v25 = vsel %vm24, %v23, 0.0
    %26 = vadd.xlane.f32.xlu0 %v25
    %v27 = vpop.xlane.xlu0 %26
    %s28 = sld [smem:[#allocation2]]
    %v29 = vstv %s28
    %v30 = vadd.f32 %v27, %v29
    %v31 = vsub.f32 0.0, %v30
    %v32 = vmul.f32 %v31, 1.442695
    %v33 = vpow.pop %v32
    %v34 = vadd.f32 %v33, 1.0
    %v35 = vrcp.pop %v34
    %vm36 = vcmask 7168
    %37 = vst.msk [vmem:[#allocation3] sm:$0xff] %vm36, %v35
    // Predicated region
    $region14: #{tpu_custom_call.1} parent=1 // pred_check
      _
    $region15: #{tpu_custom_call.1} parent=1 // pred_check_branch
      %39 = sbr.rel (0) target = $region17
    $region16: #{tpu_custom_call.1} parent=1 // pred_region
      // Predicated region
      $region18: #{tpu_custom_call.1} parent=16 // pred_check
        _
      $region19: #{tpu_custom_call.1} parent=16 // pred_check_branch
        %41 = sbr.rel (0) target = $region21
      $region20: #{tpu_custom_call.1} parent=16 // pred_region
        // Predicated region
        $region22: #{tpu_custom_call.1} parent=20 // pred_check
          _
        $region23: #{tpu_custom_call.1} parent=20 // pred_check_branch
          %43 = sbr.rel target = $region25
        $region24: #{tpu_custom_call.1} parent=20 // pred_region
          // Predicated region
          $region37: #{tpu_custom_call.1} parent=24 // pred_check
            _
          $region38: #{tpu_custom_call.1} parent=24 // pred_check_branch
            %58 = sbr.rel (0) target = $region40
          $region39: #{tpu_custom_call.1} parent=24 // pred_region
            loop: start=0, step=1, limit=1
            $region41: #{tpu_custom_call.1} parent=39 // loop_pre_header
              _
            $region42: #{tpu_custom_call.1} parent=39 // loop_header
              %s61 = sphi 0, %s65
              %p62 = scmp.ge.s32.totalorder %s61, 1
              %s66 = sphi [#allocation3], [#allocation3]
              %s67 = sphi %s3, %s3
            $region43: #{tpu_custom_call.1} parent=39 // loop_header_branch
              %64 = sbr.rel (%p62) target = $region47
            $region44: #{tpu_custom_call.1} parent=39 // loop_body
              %v68 = vld [vmem:[%s66] sm:$0x3]
              %69 = vst [vmem:[%s67] sm:$0x3] %v68
            $region45: #{tpu_custom_call.1} parent=39 // loop_footer
              %s65 = sadd.s32 1, %s61
            $region46: #{tpu_custom_call.1} parent=39 // loop_footer_branch
              %60 = sbr.rel target = $region42
            $region47: #{tpu_custom_call.1} parent=39 // loop_exit
              _
          $region40: #{tpu_custom_call.1} parent=24 // pred_fallthru
            _
        $region25: #{tpu_custom_call.1} parent=20 // pred_fallthru
          _
        // Predicated region
        $region26: #{tpu_custom_call.1} parent=20 // pred_check
          _
        $region27: #{tpu_custom_call.1} parent=20 // pred_check_branch
          %45 = sbr.rel (0) target = $region29
        $region28: #{tpu_custom_call.1} parent=20 // pred_region
          loop: start=0, step=1, limit=1
          $region30: #{tpu_custom_call.1} parent=28 // loop_pre_header
            _
          $region31: #{tpu_custom_call.1} parent=28 // loop_header
            %s48 = sphi 0, %s52
            %p49 = scmp.ge.s32.totalorder %s48, 1
            %s53 = sphi [#allocation3], [#allocation3]
            %s54 = sphi %s3, %s3
          $region32: #{tpu_custom_call.1} parent=28 // loop_header_branch
            %51 = sbr.rel (%p49) target = $region36
          $region33: #{tpu_custom_call.1} parent=28 // loop_body
            %v55 = vld [vmem:[%s53] sm:$0x3]
            %56 = vst [vmem:[%s54] sm:$0x3] %v55
          $region34: #{tpu_custom_call.1} parent=28 // loop_footer
            %s52 = sadd.s32 1, %s48
          $region35: #{tpu_custom_call.1} parent=28 // loop_footer_branch
            %47 = sbr.rel target = $region31
          $region36: #{tpu_custom_call.1} parent=28 // loop_exit
            _
        $region29: #{tpu_custom_call.1} parent=20 // pred_fallthru
          _
      $region21: #{tpu_custom_call.1} parent=16 // pred_fallthru
        _
      %70 = vnop
    $region17: #{tpu_custom_call.1} parent=1 // pred_fallthru
      _
    // Predicated region
    $region48: #{tpu_custom_call.1} parent=1 // pred_check
      _
    $region49: #{tpu_custom_call.1} parent=1 // pred_check_branch
      %72 = sbr.rel (0) target = $region51
    $region50: #{tpu_custom_call.1} parent=1 // pred_region
      _
    $region51: #{tpu_custom_call.1} parent=1 // pred_fallthru
      _

</llo_original>
